<compile_context>
chip_gen: v5e
topology: v5e:2x2
jax: 0.10.0
libtpu: 0.0.40
codegen_flags: <defaults>
</compile_context>

<pallas_src>
import jax
import jax.numpy as jnp
from jax.experimental import pallas as pl
from jax.experimental.pallas import tpu as pltpu


def _hetero_sage_kernel(x_ref, adj_ref, wc_ref, ws_ref, o_ref):
    """Grid = (row_blocks, edge_types); edge types accumulate into o_ref.

    x_ref   : (N, Finp)    bf16, resident ([x || 1], lane-padded)
    adj_ref : (tn, N)      bf16, per (row block, edge type), inv-deg folded
    wc_ref  : (Finp, Fp)   bf16, per edge type (fused neighbor weights)
    ws_ref  : (Finp, Fp)   bf16, resident (fused self weights, mean over e)
    o_ref   : (tn, Fp)     f32, VMEM-resident accumulator / output
    """
    e = pl.program_id(1)
    tn = o_ref.shape[0]
    row0 = pl.multiple_of(pl.program_id(0) * tn, tn)

    @pl.when(e == 0)
    def _():
        # Edge-type-invariant self term (bias folded via the ones column),
        # computed once per row tile.
        o_ref[...] = jnp.dot(x_ref[pl.ds(row0, tn), :], ws_ref[...],
                             preferred_element_type=jnp.float32)

    # Fused neighbor path: 2 MXU matmuls per edge type, f32 accumulation.
    m = jnp.dot(adj_ref[...], x_ref[...],
                preferred_element_type=jnp.float32)            # (tn, Finp)
    o_ref[...] += jnp.dot(m.astype(jnp.bfloat16), wc_ref[...],
                          preferred_element_type=jnp.float32)  # (tn, Fp)


def _compose_weights(wn, bn, w, b):
    """Host-side f32 weight fusion (unpadded).

    Returns:
      wc : (T, Fin+1, Fout) = [Wn_e^T ; bn_e] @ (W_agg_e^T / T)
      ws : (Fin+1, Fout)    = [mean_e W_self_e^T ; mean_e b_e]
    """
    T = w.shape[0]
    Fin = w.shape[2] // 2
    wn_aug = jnp.concatenate(
        [jnp.transpose(wn, (0, 2, 1)), bn[:, None, :]], axis=1)   # (T, Fin+1, Fin)
    wa_t = jnp.transpose(w[:, :, Fin:], (0, 2, 1)) / T            # (T, Fin, Fout)
    wc = jnp.einsum('tai,tio->tao', wn_aug, wa_t)                 # (T, Fin+1, Fout)
    ws_t = jnp.mean(w[:, :, :Fin], axis=0).T                      # (Fin, Fout)
    ws = jnp.concatenate([ws_t, jnp.mean(b, axis=0)[None, :]], 0) # (Fin+1, Fout)
    return wc, ws


def _pick_row_tile(n):
    for cand in (512, 256, 128, 64, 32, 16, 8):
        if n > cand and n % cand == 0:
            return cand
    return n


def hetero_sage_conv(x, adj_norm, wn, bn, w, b):
    """HeteroSageConvLayer forward ('mean' reduction).

    x        : (N, Fin)        node features, f32
    adj_norm : (T, N, N)       per-edge-type adjacency [etype, dst, src] with
                               clamped inverse degree already folded in, f32
    wn       : (T, Fin, Fin)   neigh_linear.weight per edge type (out, in)
    bn       : (T, Fin)        neigh_linear.bias per edge type
    w        : (T, Fout, 2Fin) linear.weight per edge type (out, [x || agg])
    b        : (T, Fout)       linear.bias per edge type
    """
    T, N, _ = adj_norm.shape
    Fin = x.shape[1]
    Fout = w.shape[1]
    Fa = Fin + 1                                  # augmented (ones column)
    Finp = ((Fa + 127) // 128) * 128              # lane-dense inner width
    Fp = ((Fout + 127) // 128) * 128              # lane-dense output width
    bf16 = jnp.bfloat16

    # ---- host-side operand prep (compose in f32, MXU operands in bf16) ----
    x_aug = jnp.concatenate([x, jnp.ones((N, 1), x.dtype)], axis=1)     # (N, Fa)
    x_p = jnp.pad(x_aug, ((0, 0), (0, Finp - Fa))).astype(bf16)         # (N, Finp)
    adj_bf = adj_norm.astype(bf16)                                      # (T, N, N)
    wc, ws = _compose_weights(wn, bn, w, b)
    wc_p = jnp.pad(wc, ((0, 0), (0, Finp - Fa), (0, Fp - Fout))).astype(bf16)
    ws_p = jnp.pad(ws, ((0, Finp - Fa), (0, Fp - Fout))).astype(bf16)

    tn = _pick_row_tile(N)

    out = pl.pallas_call(
        _hetero_sage_kernel,
        out_shape=jax.ShapeDtypeStruct((N, Fp), jnp.float32),
        grid_spec=pltpu.PrefetchScalarGridSpec(
            num_scalar_prefetch=0,
            grid=(N // tn, T),
            in_specs=[
                pl.BlockSpec((N, Finp), lambda i, e: (0, 0)),                    # x_aug
                pl.BlockSpec((pl.Squeezed(), tn, N), lambda i, e: (e, i, 0)),    # adj_e tile
                pl.BlockSpec((pl.Squeezed(), Finp, Fp), lambda i, e: (e, 0, 0)), # Wc_e
                pl.BlockSpec((Finp, Fp), lambda i, e: (0, 0)),                   # Ws (mean)
            ],
            out_specs=pl.BlockSpec((tn, Fp), lambda i, e: (i, 0)),
        ),
        compiler_params=pltpu.CompilerParams(
            # Row blocks can be split across TensorCores (v7x); the edge-type
            # (reduction) axis must stay sequential -> "arbitrary" and last.
            dimension_semantics=("parallel", "arbitrary"),
            vmem_limit_bytes=48 * 1024 * 1024),
    )(x_p, adj_bf, wc_p, ws_p)
    return out[:, :Fout]


def _xavier_uniform(key, shape, gain):
    # PyTorch xavier_uniform_ on (out_features, in_features)
    fan_out, fan_in = shape
    a = gain * (6.0 / (fan_in + fan_out)) ** 0.5
    return jax.random.uniform(key, shape, jnp.float32, -a, a)


if __name__ == "__main__":
    key = jax.random.PRNGKey(0)
    N, Fin, Fout, E, T = 64, 32, 32, 256, 3   # nodes, in, out, edges, edge types
    ks = jax.random.split(key, 8)

    x = jax.random.normal(ks[0], (N, Fin), jnp.float32)
    src = jax.random.randint(ks[1], (E,), 0, N)
    dst = jax.random.randint(ks[2], (E,), 0, N)
    edge_type = jax.random.randint(ks[3], (E,), 0, T)

    # One independently-initialized SageConv per edge type (mirrors the
    # nn.ModuleDict in the reference; xavier with relu gain, small biases).
    gain = 2.0 ** 0.5
    wn = jnp.stack([_xavier_uniform(k, (Fin, Fin), gain)
                    for k in jax.random.split(ks[4], T)])             # (T,Fin,Fin)
    w = jnp.stack([_xavier_uniform(k, (Fout, 2 * Fin), gain)
                   for k in jax.random.split(ks[5], T)])              # (T,Fout,2Fin)
    bn = 0.1 * jax.random.normal(ks[6], (T, Fin), jnp.float32)
    b = 0.1 * jax.random.normal(ks[7], (T, Fout), jnp.float32)

    # Glue: dense per-edge-type adjacency [etype, dst, src] with multiplicity,
    # clamped-mean normalization folded in on the host.
    adj = jnp.zeros((T, N, N), jnp.float32).at[edge_type, dst, src].add(1.0)
    deg = adj.sum(-1, keepdims=True)
    adj_norm = adj / jnp.maximum(deg, 1.0)

    out = hetero_sage_conv(x, adj_norm, wn, bn, w, b)
    out = jax.block_until_ready(out)

    # Pure-JAX reference replicating the kernel's bf16 operand quantization
    # and fused-weight composition (MXU accumulates in f32 either way).
    def bf(a):
        return a.astype(jnp.bfloat16).astype(jnp.float32)

    x_aug = jnp.concatenate([x, jnp.ones((N, 1), jnp.float32)], axis=1)
    wc_f, ws_f = _compose_weights(wn, bn, w, b)
    xb = bf(x_aug)
    ref = xb @ bf(ws_f)
    for e in range(T):
        m = bf(adj_norm[e]) @ xb
        ref = ref + bf(m) @ bf(wc_f[e])

    assert out.shape == (N, Fout)
    assert jnp.allclose(out, ref, atol=1e-2, rtol=1e-2)

    print("KERNEL_OK")
</pallas_src>

<mosaic_0001>
module attributes {stable_mosaic.version = 11 : i64} {
  func.func @_hetero_sage_kernel(%arg0: i32, %arg1: i32, %arg2: memref<64x128xbf16, #tpu.memory_space<vmem>>, %arg3: memref<1x32x64xbf16, #tpu.memory_space<vmem>>, %arg4: memref<1x128x128xbf16, #tpu.memory_space<vmem>>, %arg5: memref<128x128xbf16, #tpu.memory_space<vmem>>, %arg6: memref<32x128xf32, #tpu.memory_space<vmem>>) attributes {dimension_semantics = [#tpu.dimension_semantics<parallel>, #tpu.dimension_semantics<arbitrary>], iteration_bounds = array<i64: 2, 3>, scalar_prefetch = 0 : i64, scratch_operands = 0 : i64, tpu.core_type = #tpu.core_type<tc>, window_params = [{pipeline_mode = #tpu.pipeline_mode<synchronous>, transform_indices = @transform_0, window_bounds = array<i64: 64, 128>}, {transform_indices = @transform_1, window_bounds = array<i64: 1, 32, 64>}, {transform_indices = @transform_2, window_bounds = array<i64: 1, 128, 128>}, {pipeline_mode = #tpu.pipeline_mode<synchronous>, transform_indices = @transform_3, window_bounds = array<i64: 128, 128>}, {transform_indices = @transform_4, window_bounds = array<i64: 32, 128>}]} {
    %c32_i32 = arith.constant 32 : i32
    %0 = arith.muli %arg0, %c32_i32 : i32
    %1 = tpu.assume_multiple %0, 32 : i32
    %c0_i32 = arith.constant 0 : i32
    %2 = arith.cmpi eq, %arg1, %c0_i32 : i32
    %3 = arith.extui %2 : i1 to i32
    %c0_i32_0 = arith.constant 0 : i32
    %4 = arith.cmpi ne, %3, %c0_i32_0 : i32
    scf.if %4 {
      %16 = arith.index_cast %1 : i32 to index
      %c0_13 = arith.constant 0 : index
      %17 = vector.load %arg2[%16, %c0_13] : memref<64x128xbf16, #tpu.memory_space<vmem>>, vector<32x128xbf16>
      %c0_14 = arith.constant 0 : index
      %c0_15 = arith.constant 0 : index
      %18 = vector.load %arg5[%c0_14, %c0_15] : memref<128x128xbf16, #tpu.memory_space<vmem>>, vector<128x128xbf16>
      %cst_16 = arith.constant dense<0.000000e+00> : vector<32x128xf32>
      %19 = tpu.matmul %17, %18, %cst_16 {dimension_numbers = #tpu.dot_dimension_numbers<[1], [0], [0], [1], [0, 0, 1, 1], [], []>} : vector<32x128xbf16>, vector<128x128xbf16>, vector<32x128xf32> -> vector<32x128xf32>
      %c0_17 = arith.constant 0 : index
      %c0_18 = arith.constant 0 : index
      %20 = vector.load %arg6[%c0_17, %c0_18] : memref<32x128xf32, #tpu.memory_space<vmem>>, vector<32x128xf32>
      tpu.vector_store %arg6[%c0_17, %c0_18], %19 {strides = array<i32>} : memref<32x128xf32, #tpu.memory_space<vmem>>, vector<32x128xf32>,
    } else {
    }
    %c0 = arith.constant 0 : index
    %c0_1 = arith.constant 0 : index
    %c0_2 = arith.constant 0 : index
    %5 = vector.load %arg3[%c0, %c0_1, %c0_2] : memref<1x32x64xbf16, #tpu.memory_space<vmem>>, vector<1x32x64xbf16>
    %6 = vector.shape_cast %5 : vector<1x32x64xbf16> to vector<32x64xbf16>
    %c0_3 = arith.constant 0 : index
    %c0_4 = arith.constant 0 : index
    %7 = vector.load %arg2[%c0_3, %c0_4] : memref<64x128xbf16, #tpu.memory_space<vmem>>, vector<64x128xbf16>
    %cst = arith.constant dense<0.000000e+00> : vector<32x128xf32>
    %8 = tpu.matmul %6, %7, %cst {dimension_numbers = #tpu.dot_dimension_numbers<[1], [0], [0], [1], [0, 0, 1, 1], [], []>} : vector<32x64xbf16>, vector<64x128xbf16>, vector<32x128xf32> -> vector<32x128xf32>
    %c0_5 = arith.constant 0 : index
    %c0_6 = arith.constant 0 : index
    %9 = vector.load %arg6[%c0_5, %c0_6] : memref<32x128xf32, #tpu.memory_space<vmem>>, vector<32x128xf32>
    %10 = arith.truncf %8 : vector<32x128xf32> to vector<32x128xbf16>
    %c0_7 = arith.constant 0 : index
    %c0_8 = arith.constant 0 : index
    %c0_9 = arith.constant 0 : index
    %11 = vector.load %arg4[%c0_7, %c0_8, %c0_9] : memref<1x128x128xbf16, #tpu.memory_space<vmem>>, vector<1x128x128xbf16>
    %12 = vector.shape_cast %11 : vector<1x128x128xbf16> to vector<128x128xbf16>
    %cst_10 = arith.constant dense<0.000000e+00> : vector<32x128xf32>
    %13 = tpu.matmul %10, %12, %cst_10 {dimension_numbers = #tpu.dot_dimension_numbers<[1], [0], [0], [1], [0, 0, 1, 1], [], []>} : vector<32x128xbf16>, vector<128x128xbf16>, vector<32x128xf32> -> vector<32x128xf32>
    %14 = arith.addf %9, %13 : vector<32x128xf32>
    %c0_11 = arith.constant 0 : index
    %c0_12 = arith.constant 0 : index
    %15 = vector.load %arg6[%c0_11, %c0_12] : memref<32x128xf32, #tpu.memory_space<vmem>>, vector<32x128xf32>
    tpu.vector_store %arg6[%c0_11, %c0_12], %14 {strides = array<i32>} : memref<32x128xf32, #tpu.memory_space<vmem>>, vector<32x128xf32>,
    return
  }
  func.func @transform_0(%arg0: i32, %arg1: i32) -> (i32, i32) {
    %c0_i32 = arith.constant 0 : i32
    %c0_i32_0 = arith.constant 0 : i32
    %c0_i32_1 = arith.constant 0 : i32
    return %c0_i32, %c0_i32_0 : i32, i32
  }
  func.func @transform_1(%arg0: i32, %arg1: i32) -> (i32, i32, i32) {
    %c0_i32 = arith.constant 0 : i32
    %c0_i32_0 = arith.constant 0 : i32
    return %arg1, %arg0, %c0_i32 : i32, i32, i32
  }
  func.func @transform_2(%arg0: i32, %arg1: i32) -> (i32, i32, i32) {
    %c0_i32 = arith.constant 0 : i32
    %c0_i32_0 = arith.constant 0 : i32
    %c0_i32_1 = arith.constant 0 : i32
    return %arg1, %c0_i32, %c0_i32_0 : i32, i32, i32
  }
  func.func @transform_3(%arg0: i32, %arg1: i32) -> (i32, i32) {
    %c0_i32 = arith.constant 0 : i32
    %c0_i32_0 = arith.constant 0 : i32
    %c0_i32_1 = arith.constant 0 : i32
    return %c0_i32, %c0_i32_0 : i32, i32
  }
  func.func @transform_4(%arg0: i32, %arg1: i32) -> (i32, i32) {
    %c0_i32 = arith.constant 0 : i32
    %c0_i32_0 = arith.constant 0 : i32
    return %arg0, %c0_i32 : i32, i32
  }
}

</mosaic_0001>

<llo_original>
// kernel: tpu_custom_call.1
$region0: #{tpu_custom_call.1}
  #allocation0 [shape = 'u32[]', space=smem, size = 0x4, offset = 0x4, fixed_abs, tag = 'smem constant byte address 0x4 - core index']
  #allocation1 [shape = 'u32[72,128]{1,0:T(1,128)}', space=vmem, size = 0x9000, scoped, tag = 'internal scratch']
  %s0 = inlined_call_operand.hbm [shape: bf16[64,128], index: 0, kind: input, shape index: {}]
  %s1 = inlined_call_operand.hbm [shape: bf16[3,64,64], index: 1, kind: input, shape index: {}]
  %s2 = inlined_call_operand.hbm [shape: bf16[3,128,128], index: 2, kind: input, shape index: {}]
  %s3 = inlined_call_operand.hbm [shape: bf16[128,128], index: 3, kind: input, shape index: {}]
  %s4 = inlined_call_operand.hbm [shape: f32[64,128], index: 4, kind: output, shape index: {}]
  %s5 = sld [smem:[#allocation0]]
  $region69: #{tpu_custom_call.1} parent=0
    _
  %s7 = ssub.s32 1, %s5
  %s8 = scalar_select 0, %s7, %s5
  $region1: #{tpu_custom_call.1} parent=0
    #allocation2 [shape = 'u8[16384]{0}', space=vmem, size = 0x4000, scoped, tag = 'input window, operand 0, single buffered']
    #allocation3 [shape = 's32[2]{0}', space=sflag, size = 0x8, scoped, tag = 'scoped memory for tpu_custom_call.1']
    #allocation4 [shape = 's32[2]{0}', space=sflag, size = 0x8, scoped, tag = 'scoped memory for tpu_custom_call.1']
    #allocation5 [shape = 'u8[16384]{0}', space=vmem, size = 0x4000, scoped, tag = 'input window, operand 1']
    #allocation6 [shape = 's32[2]{0}', space=sflag, size = 0x8, scoped, tag = 'scoped memory for tpu_custom_call.1']
    #allocation7 [shape = 'u8[65536]{0}', space=vmem, size = 0x10000, scoped, tag = 'input window, operand 2']
    #allocation8 [shape = 'u8[32768]{0}', space=vmem, size = 0x8000, scoped, tag = 'input window, operand 3, single buffered']
    #allocation9 [shape = 's32[1]{0}', space=sflag, size = 0x4, scoped, tag = 'scoped memory for tpu_custom_call.1']
    #allocation10 [shape = 'u8[32768]{0}', space=vmem, size = 0x8000, scoped, tag = 'output window, operand 0']
    %9 = vsyncpa [#allocation3], 0
    %10 = vsyncpa [#allocation6], 0
    %s11 = scalar_lea.sflag [#allocation6], 1
    %12 = vsyncpa %s11, 0
    %13 = vsyncpa [#allocation9], 0
    %14 = vsyncpa [#allocation4], 0
    %s15 = scalar_lea.sflag [#allocation4], 1
    %16 = vsyncpa %s15, 0
    loop: start=0, step=1, limit=8
    $region2: #{tpu_custom_call.1} parent=1 // loop_pre_header
      _
    $region3: #{tpu_custom_call.1} parent=1 // loop_header
      %s18 = sphi 0, %s22
      %p19 = scmp.ge.s32.totalorder %s18, 8
      %s25 = sphi 0, %s37
      %s26 = sphi 0, %s33
      %s27 = sphi 0, %s25
      %s28 = sphi 0, %s26
      %s29 = sphi 0, %s27
      %s30 = sphi 0, %s28
      %s38 = sphi 0, %s38
      %s40 = sphi 0, %s38
      %s41 = sphi 0, %s40
      %s55 = sphi 0, %s41
      %s63 = sphi 0, %s65
      %s66 = sphi 0, %s63
      %s67 = sphi 0, %s66
      %s83 = sphi 0, %s67
      %s89 = sphi 0, %s91
      %s92 = sphi 0, %s89
      %s93 = sphi 0, %s92
      %s109 = sphi 0, %s93
      %s113 = sphi 0, %s113
      %s115 = sphi 0, %s113
      %s116 = sphi 0, %s115
      %s130 = sphi 0, %s116
      %s136 = sphi 0, %s138
      %s139 = sphi 0, %s136
      %s140 = sphi 0, %s139
      %s156 = sphi 0, %s140
    $region4: #{tpu_custom_call.1} parent=1 // loop_header_branch
      %21 = sbr.rel (%p19) target = $region8
    $region5: #{tpu_custom_call.1} parent=1 // loop_body
      %s23 = ssub.s32 %s18, 1
      %s24 = ssub.s32 %s18, 2
      %s31 = sadd.s32 1, %s26
      %p32 = scmp.ge.s32.totalorder %s31, 3
      %s33 = scalar_select %p32, 0, %s31
      %s34 = sadd.s32 1, %s25
      %s35 = scalar_select %p32, %s34, %s25
      %p36 = scmp.ge.s32.totalorder %s35, 2
      %s37 = scalar_select %p36, 0, %s35
      %s39 = sadd.s32 %s38, 1
      %p42 = scmp.eq.s32.totalorder %s18, 5
      %p43 = scmp.ne.s32.totalorder %s38, %s40
      %p44 = scmp.eq.s32.totalorder %s18, 0
      %p45 = por %p43, %p44
      %p46 = scmp.ne.s32.totalorder %s38, %s40
      %p47 = scmp.eq.s32.totalorder %s23, 5
      %p48 = por %p46, %p47
      %p49 = scmp.ne.s32.totalorder %s40, %s41
      %p50 = scmp.eq.s32.totalorder %s23, 0
      %p51 = por %p49, %p50
      %p52 = scmp.ne.s32.totalorder %s40, %s41
      %p53 = scmp.eq.s32.totalorder %s24, 5
      %p54 = por %p52, %p53
      %p56 = scmp.ne.s32.totalorder %s41, %s55
      %p57 = scmp.eq.s32.totalorder %s24, 0
      %p58 = por %p56, %p57
      %s59 = ssub.s32 %s26, %s33
      %s60 = ssub.s32 %s25, %s37
      %s61 = sor.u32 %s59, %s60
      %p62 = scmp.eq.s32.totalorder %s61, 0
      %s64 = sadd.s32 %s63, 1
      %s65 = scalar_select %p62, %s63, %s64
      %p68 = pneg %p62
      %p69 = scmp.eq.s32.totalorder %s18, 5
      %p70 = por %p68, %p69
      %p71 = scmp.ne.s32.totalorder %s63, %s66
      %p72 = scmp.eq.s32.totalorder %s18, 0
      %p73 = por %p71, %p72
      %p74 = scmp.ne.s32.totalorder %s63, %s66
      %p75 = scmp.eq.s32.totalorder %s23, 5
      %p76 = por %p74, %p75
      %p77 = scmp.ne.s32.totalorder %s66, %s67
      %p78 = scmp.eq.s32.totalorder %s23, 0
      %p79 = por %p77, %p78
      %p80 = scmp.ne.s32.totalorder %s66, %s67
      %p81 = scmp.eq.s32.totalorder %s24, 5
      %p82 = por %p80, %p81
      %p84 = scmp.ne.s32.totalorder %s67, %s83
      %p85 = scmp.eq.s32.totalorder %s24, 0
      %p86 = por %p84, %p85
      %s87 = ssub.s32 %s26, %s33
      %p88 = scmp.eq.s32.totalorder %s87, 0
      %s90 = sadd.s32 %s89, 1
      %s91 = scalar_select %p88, %s89, %s90
      %p94 = pneg %p88
      %p95 = scmp.eq.s32.totalorder %s18, 5
      %p96 = por %p94, %p95
      %p97 = scmp.ne.s32.totalorder %s89, %s92
      %p98 = scmp.eq.s32.totalorder %s18, 0
      %p99 = por %p97, %p98
      %p100 = scmp.ne.s32.totalorder %s89, %s92
      %p101 = scmp.eq.s32.totalorder %s23, 5
      %p102 = por %p100, %p101
      %p103 = scmp.ne.s32.totalorder %s92, %s93
      %p104 = scmp.eq.s32.totalorder %s23, 0
      %p105 = por %p103, %p104
      %p106 = scmp.ne.s32.totalorder %s92, %s93
      %p107 = scmp.eq.s32.totalorder %s24, 5
      %p108 = por %p106, %p107
      %p110 = scmp.ne.s32.totalorder %s93, %s109
      %p111 = scmp.eq.s32.totalorder %s24, 0
      %p112 = por %p110, %p111
      %s114 = sadd.s32 %s113, 1
      %p117 = scmp.eq.s32.totalorder %s18, 5
      %p118 = scmp.ne.s32.totalorder %s113, %s115
      %p119 = scmp.eq.s32.totalorder %s18, 0
      %p120 = por %p118, %p119
      %p121 = scmp.ne.s32.totalorder %s113, %s115
      %p122 = scmp.eq.s32.totalorder %s23, 5
      %p123 = por %p121, %p122
      %p124 = scmp.ne.s32.totalorder %s115, %s116
      %p125 = scmp.eq.s32.totalorder %s23, 0
      %p126 = por %p124, %p125
      %p127 = scmp.ne.s32.totalorder %s115, %s116
      %p128 = scmp.eq.s32.totalorder %s24, 5
      %p129 = por %p127, %p128
      %p131 = scmp.ne.s32.totalorder %s116, %s130
      %p132 = scmp.eq.s32.totalorder %s24, 0
      %p133 = por %p131, %p132
      %s134 = ssub.s32 %s25, %s37
      %p135 = scmp.eq.s32.totalorder %s134, 0
      %s137 = sadd.s32 %s136, 1
      %s138 = scalar_select %p135, %s136, %s137
      %p141 = pneg %p135
      %p142 = scmp.eq.s32.totalorder %s18, 5
      %p143 = por %p141, %p142
      %p144 = scmp.ne.s32.totalorder %s136, %s139
      %p145 = scmp.eq.s32.totalorder %s18, 0
      %p146 = por %p144, %p145
      %p147 = scmp.ne.s32.totalorder %s136, %s139
      %p148 = scmp.eq.s32.totalorder %s23, 5
      %p149 = por %p147, %p148
      %p150 = scmp.ne.s32.totalorder %s139, %s140
      %p151 = scmp.eq.s32.totalorder %s23, 0
      %p152 = por %p150, %p151
      %p153 = scmp.ne.s32.totalorder %s139, %s140
      %p154 = scmp.eq.s32.totalorder %s24, 5
      %p155 = por %p153, %p154
      %p157 = scmp.ne.s32.totalorder %s140, %s156
      %p158 = scmp.eq.s32.totalorder %s24, 0
      %p159 = por %p157, %p158
      %p160 = scmp.le.s32.totalorder 1, %s18
      %p161 = scmp.lt.s32.totalorder %s18, 7
      %p162 = pnand %p160, %p161
      %p163 = pneg %p162
      // Predicated region
      $region9: #{tpu_custom_call.1} parent=5 // pred_check
        _
      $region10: #{tpu_custom_call.1} parent=5 // pred_check_branch
        %165 = sbr.rel (%p162) target = $region12
      $region11: #{tpu_custom_call.1} parent=5 // pred_region
        %s166 = ssub.s32 %s18, 1
        // Predicated region
        $region13: #{tpu_custom_call.1} parent=11 // pred_check
          %p167 = pneg %p51
        $region14: #{tpu_custom_call.1} parent=11 // pred_check_branch
          %169 = sbr.rel (%p167) target = $region16
        $region15: #{tpu_custom_call.1} parent=11 // pred_region
          %171 = vsyncadd [#allocation3], 0
          %s172 = sshll.u32 %s0, 4
          %s173 = int_to_ptr.hbm [resolvable:$true] %s172
          %s174 = sshll.u32 [#allocation2], 4
          %s175 = int_to_ptr.vmem [resolvable:$true] %s174
          %180 = dma.hbm_to_vmem [thread:$0]  %s173, 512, %s175, [#allocation3], 64, 64, 4
        $region16: #{tpu_custom_call.1} parent=11 // pred_fallthru
          _
        // Predicated region
        $region17: #{tpu_custom_call.1} parent=11 // pred_check
          %p181 = pneg %p126
        $region18: #{tpu_custom_call.1} parent=11 // pred_check_branch
          %183 = sbr.rel (%p181) target = $region20
        $region19: #{tpu_custom_call.1} parent=11 // pred_region
          %185 = vsyncadd [#allocation9], 0
          %s186 = sshll.u32 %s3, 4
          %s187 = int_to_ptr.hbm [resolvable:$true] %s186
          %s188 = sshll.u32 [#allocation8], 4
          %s189 = int_to_ptr.vmem [resolvable:$true] %s188
          %194 = dma.hbm_to_vmem [thread:$0]  %s187, 1024, %s189, [#allocation9], 64, 64, 4
        $region20: #{tpu_custom_call.1} parent=11 // pred_fallthru
          _
      $region12: #{tpu_custom_call.1} parent=5 // pred_fallthru
        _
      %p195 = scmp.lt.s32.totalorder %s18, 6
      // Predicated region
      $region21: #{tpu_custom_call.1} parent=5 // pred_check
        %p196 = pneg %p195
      $region22: #{tpu_custom_call.1} parent=5 // pred_check_branch
        %198 = sbr.rel (%p196) target = $region24
      $region23: #{tpu_custom_call.1} parent=5 // pred_region
        // Predicated region
        $region25: #{tpu_custom_call.1} parent=23 // pred_check
          %p199 = pneg %p73
        $region26: #{tpu_custom_call.1} parent=23 // pred_check_branch
          %201 = sbr.rel (%p199) target = $region28
        $region27: #{tpu_custom_call.1} parent=23 // pred_region
          %s202 = sand.u32 %s18, 1
          %s203 = scalar_lea.sflag [#allocation6], %s202
          %s204 = sand.u32 %s63, 1
          %s205 = smul.addr %s204, 16
          %s206 = scalar_lea.vmem [#allocation5], %s205
          %s207 = smul.u32 4, %s25
          %209 = vsyncadd %s203, 0
          %s210 = smul.addr %s26, 8
          %s211 = sadd.s32 %s207, %s210
          %s212 = smul.addr %s211, 4
          %s213 = scalar_lea.hbm %s1, %s212
          %s214 = sshll.u32 %s213, 4
          %s215 = int_to_ptr.hbm [resolvable:$true] %s214
          %s216 = sshll.u32 %s206, 4
          %s217 = int_to_ptr.vmem [resolvable:$true] %s216
          %222 = dma.hbm_to_vmem [thread:$0]  %s215, 256, %s217, %s203, 64, 64, 4
        $region28: #{tpu_custom_call.1} parent=23 // pred_fallthru
          _
        // Predicated region
        $region29: #{tpu_custom_call.1} parent=23 // pred_check
          %p223 = pneg %p99
        $region30: #{tpu_custom_call.1} parent=23 // pred_check_branch
          %225 = sbr.rel (%p223) target = $region32
        $region31: #{tpu_custom_call.1} parent=23 // pred_region
          %s226 = sand.u32 %s18, 1
          %s227 = scalar_lea.sflag [#allocation6], %s226
          %s228 = sand.u32 %s89, 1
          %s229 = smul.addr %s228, 64
          %s230 = scalar_lea.vmem [#allocation7], %s229
          %232 = vsyncadd %s227, 0
          %s233 = smul.addr %s26, 16
          %s234 = smul.addr %s233, 4
          %s235 = scalar_lea.hbm %s2, %s234
          %s236 = sshll.u32 %s235, 4
          %s237 = int_to_ptr.hbm [resolvable:$true] %s236
          %s238 = sshll.u32 %s230, 4
          %s239 = int_to_ptr.vmem [resolvable:$true] %s238
          %244 = dma.hbm_to_vmem [thread:$0]  %s237, 1024, %s239, %s227, 64, 64, 4
        $region32: #{tpu_custom_call.1} parent=23 // pred_fallthru
          _
      $region24: #{tpu_custom_call.1} parent=5 // pred_fallthru
        _
      %p245 = scmp.le.s32.totalorder 1, %s18
      %p246 = scmp.lt.s32.totalorder %s18, 7
      %p247 = pnand %p245, %p246
      %p248 = pneg %p247
      // Predicated region
      $region33: #{tpu_custom_call.1} parent=5 // pred_check
        _
      $region34: #{tpu_custom_call.1} parent=5 // pred_check_branch
        %250 = sbr.rel (%p247) target = $region36
      $region35: #{tpu_custom_call.1} parent=5 // pred_region
        %s251 = ssub.s32 %s18, 1
        // Predicated region
        $region37: #{tpu_custom_call.1} parent=35 // pred_check
          %p252 = pneg %p51
        $region38: #{tpu_custom_call.1} parent=35 // pred_check_branch
          %254 = sbr.rel (%p252) target = $region40
        $region39: #{tpu_custom_call.1} parent=35 // pred_region
          %256 = dma.done [#allocation3], 512
        $region40: #{tpu_custom_call.1} parent=35 // pred_fallthru
          _
        %s257 = sand.u32 %s23, 1
        %s258 = scalar_lea.sflag [#allocation6], %s257
        %s259 = sand.u32 %s66, 1
        %s260 = smul.addr %s259, 16
        %s261 = scalar_lea.vmem [#allocation5], %s260
        // Predicated region
        $region41: #{tpu_custom_call.1} parent=35 // pred_check
          %p262 = pneg %p79
        $region42: #{tpu_custom_call.1} parent=35 // pred_check_branch
          %264 = sbr.rel (%p262) target = $region44
        $region43: #{tpu_custom_call.1} parent=35 // pred_region
          %266 = dma.done %s258, 256
        $region44: #{tpu_custom_call.1} parent=35 // pred_fallthru
          _
        %s267 = sand.u32 %s23, 1
        %s268 = scalar_lea.sflag [#allocation6], %s267
        %s269 = sand.u32 %s92, 1
        %s270 = smul.addr %s269, 64
        %s271 = scalar_lea.vmem [#allocation7], %s270
        // Predicated region
        $region45: #{tpu_custom_call.1} parent=35 // pred_check
          %p272 = pneg %p105
        $region46: #{tpu_custom_call.1} parent=35 // pred_check_branch
          %274 = sbr.rel (%p272) target = $region48
        $region47: #{tpu_custom_call.1} parent=35 // pred_region
          %276 = dma.done %s268, 1024
        $region48: #{tpu_custom_call.1} parent=35 // pred_fallthru
          _
        // Predicated region
        $region49: #{tpu_custom_call.1} parent=35 // pred_check
          %p277 = pneg %p126
        $region50: #{tpu_custom_call.1} parent=35 // pred_check_branch
          %279 = sbr.rel (%p277) target = $region52
        $region51: #{tpu_custom_call.1} parent=35 // pred_region
          %281 = dma.done [#allocation9], 1024
        $region52: #{tpu_custom_call.1} parent=35 // pred_fallthru
          _
        %p282 = pneg %p51
        %p283 = pneg %p48
        %s284 = sand.u32 %s23, 1
        %s285 = scalar_lea.sflag [#allocation6], %s284
        %s286 = sand.u32 %s66, 1
        %s287 = smul.addr %s286, 16
        %s288 = scalar_lea.vmem [#allocation5], %s287
        %p289 = pneg %p79
        %p290 = pneg %p76
        %s291 = sand.u32 %s23, 1
        %s292 = scalar_lea.sflag [#allocation6], %s291
        %s293 = sand.u32 %s92, 1
        %s294 = smul.addr %s293, 64
        %s295 = scalar_lea.vmem [#allocation7], %s294
        %p296 = pneg %p105
        %p297 = pneg %p102
        %p298 = pneg %p126
        %p299 = pneg %p123
        %p300 = pneg %p152
        %p301 = pneg %p149
        %s302 = sand.u32 %s139, 1
        %s303 = scalar_lea.sflag [#allocation4], %s302
        %s304 = sand.u32 %s139, 1
        %s305 = smul.addr %s304, 32
        %s306 = scalar_lea.vmem [#allocation10], %s305
        %s307 = smul.u32 4, %s27
        %s308 = smul.u32 4, %s27
        %s310 = smul.u32 %s27, 32
        %p311 = scmp.eq.s32.totalorder %s28, 0
        // Predicated region
        $region53: #{tpu_custom_call.1} parent=35 // pred_check
          %p312 = pneg %p311
        $region54: #{tpu_custom_call.1} parent=35 // pred_check_branch
          %314 = sbr.rel (%p312) target = $region56
        $region55: #{tpu_custom_call.1} parent=35 // pred_region
          %s315 = sshra.s32 %s310, 3
          %s316 = sand.u32 %s310, 7
          %s317 = smul.addr %s315, 4
          %s318 = scalar_lea.vmem [#allocation2], %s317
          %v319 = vld [vmem:[%s318] sm:$0xf]
          %v320 = vld [vmem:[%s318 + $0x4] sm:$0xf]
          %v321 = vld [vmem:[%s318 + $0x8] sm:$0xf]
          %v322 = vld [vmem:[%s318 + $0xc] sm:$0xf]
          %v323 = vld [vmem:[#allocation8] sm:$0xf]
          %v324 = vld [vmem:[#allocation8 + $0x4] sm:$0xf]
          %v325 = vld [vmem:[#allocation8 + $0x8] sm:$0xf]
          %v326 = vld [vmem:[#allocation8 + $0xc] sm:$0xf]
          %v327 = vld [vmem:[#allocation8 + $0x10] sm:$0xf]
          %v328 = vld [vmem:[#allocation8 + $0x14] sm:$0xf]
          %v329 = vld [vmem:[#allocation8 + $0x18] sm:$0xf]
          %v330 = vld [vmem:[#allocation8 + $0x1c] sm:$0xf]
          %v331 = vld [vmem:[#allocation8 + $0x20] sm:$0xf]
          %v332 = vld [vmem:[#allocation8 + $0x24] sm:$0xf]
          %v333 = vld [vmem:[#allocation8 + $0x28] sm:$0xf]
          %v334 = vld [vmem:[#allocation8 + $0x2c] sm:$0xf]
          %v335 = vld [vmem:[#allocation8 + $0x30] sm:$0xf]
          %v336 = vld [vmem:[#allocation8 + $0x34] sm:$0xf]
          %v337 = vld [vmem:[#allocation8 + $0x38] sm:$0xf]
          %v338 = vld [vmem:[#allocation8 + $0x3c] sm:$0xf]
          %v343 = vunpack.c.l.b16 %v319
          %v344 = vunpack.c.l.b16 %v320
          %v345 = vunpack.c.l.b16 %v321
          %v346 = vunpack.c.l.b16 %v322
          %v347 = vpack.c.b16 %v344, %v343
          %v348 = vpack.c.b16 %v346, %v345
          %v367 = vunpack.c.l.b16 %v323
          %v368 = vunpack.c.l.b16 %v324
          %v369 = vunpack.c.l.b16 %v325
          %v370 = vunpack.c.l.b16 %v326
          %v371 = vunpack.c.l.b16 %v327
          %v372 = vunpack.c.l.b16 %v328
          %v373 = vunpack.c.l.b16 %v329
          %v374 = vunpack.c.l.b16 %v330
          %v375 = vunpack.c.l.b16 %v331
          %v376 = vunpack.c.l.b16 %v332
          %v377 = vunpack.c.l.b16 %v333
          %v378 = vunpack.c.l.b16 %v334
          %v379 = vunpack.c.l.b16 %v335
          %v380 = vunpack.c.l.b16 %v336
          %v381 = vunpack.c.l.b16 %v337
          %v382 = vunpack.c.l.b16 %v338
          %v383 = vpack.c.b16 %v368, %v367
          %v384 = vpack.c.b16 %v370, %v369
          %v385 = vpack.c.b16 %v372, %v371
          %v386 = vpack.c.b16 %v374, %v373
          %v387 = vpack.c.b16 %v376, %v375
          %v388 = vpack.c.b16 %v378, %v377
          %v389 = vpack.c.b16 %v380, %v379
          %v390 = vpack.c.b16 %v382, %v381
          %399 = vmatpush.bf16.msra.mxu0 %v390
          %400 = vmatpush.bf16.msra.mxu0 %v389
          %401 = vmatpush.bf16.msra.mxu0 %v388
          %402 = vmatpush.bf16.msra.mxu0 %v387
          %403 = vmatpush.bf16.msra.mxu0 %v386
          %404 = vmatpush.bf16.msra.mxu0 %v385
          %405 = vmatpush.bf16.msra.mxu0 %v384
          %406 = vmatpush.bf16.msra.mxu0 %v383
          %407 = vmatmul.bf16.gmra.mxu0 %v347
          %v408 = vpop.f32.mrf.mxu0
          %v409 = vadd.f32 0.0, %v408
          %v410 = vpop.f32.mrf.mxu0
          %v411 = vadd.f32 0.0, %v410
          %412 = vmatmul.bf16.gmra.mxu0 %v348
          %v413 = vpop.f32.mrf.mxu0
          %v414 = vadd.f32 0.0, %v413
          %v415 = vpop.f32.mrf.mxu0
          %v416 = vadd.f32 0.0, %v415
          %417 = vdwg.mxu0
          %418 = vst [vmem:[%s306] sm:$0xff] %v409
          %419 = vst [vmem:[%s306 + $0x8] sm:$0xff] %v411
          %420 = vst [vmem:[%s306 + $0x10] sm:$0xff] %v414
          %421 = vst [vmem:[%s306 + $0x18] sm:$0xff] %v416
        $region56: #{tpu_custom_call.1} parent=35 // pred_fallthru
          _
        %v422 = vld [vmem:[%s261] sm:$0xf]
        %v423 = vld [vmem:[%s261 + $0x4] sm:$0xf]
        %v424 = vld [vmem:[%s261 + $0x8] sm:$0xf]
        %v425 = vld [vmem:[%s261 + $0xc] sm:$0xf]
        %v426 = vld [vmem:[#allocation2] sm:$0xf]
        %v427 = vld [vmem:[#allocation2 + $0x4] sm:$0xf]
        %v428 = vld [vmem:[#allocation2 + $0x8] sm:$0xf]
        %v429 = vld [vmem:[#allocation2 + $0xc] sm:$0xf]
        %v430 = vld [vmem:[#allocation2 + $0x10] sm:$0xf]
        %v431 = vld [vmem:[#allocation2 + $0x14] sm:$0xf]
        %v432 = vld [vmem:[#allocation2 + $0x18] sm:$0xf]
        %v433 = vld [vmem:[#allocation2 + $0x1c] sm:$0xf]
        %v438 = vunpack.c.l.b16 %v422
        %v439 = vunpack.c.l.b16 %v423
        %v440 = vunpack.c.l.b16 %v424
        %v441 = vunpack.c.l.b16 %v425
        %v442 = vpack.c.b16 %v439, %v438
        %v443 = vpack.c.b16 %v441, %v440
        %v452 = vunpack.c.l.b16 %v426
        %v453 = vunpack.c.l.b16 %v427
        %v454 = vunpack.c.l.b16 %v428
        %v455 = vunpack.c.l.b16 %v429
        %v456 = vunpack.c.l.b16 %v430
        %v457 = vunpack.c.l.b16 %v431
        %v458 = vunpack.c.l.b16 %v432
        %v459 = vunpack.c.l.b16 %v433
        %v460 = vpack.c.b16 %v453, %v452
        %v461 = vpack.c.b16 %v455, %v454
        %v462 = vpack.c.b16 %v457, %v456
        %v463 = vpack.c.b16 %v459, %v458
        %vm468 = vcmask 523264
        %v470 = vsel %vm468, %v442, 0
        %v473 = vsel %vm468, %v443, 0
        %475 = vmatpush.bf16.msra.mxu0 0
        %476 = vmatpush.bf16.msra.mxu0 0
        %477 = vmatpush.bf16.msra.mxu0 0
        %478 = vmatpush.bf16.msra.mxu0 0
        %479 = vmatpush.bf16.msra.mxu0 %v463
        %480 = vmatpush.bf16.msra.mxu0 %v462
        %481 = vmatpush.bf16.msra.mxu0 %v461
        %482 = vmatpush.bf16.msra.mxu0 %v460
        %483 = vmatmul.bf16.gmra.mxu0 %v470
        %v484 = vpop.f32.mrf.mxu0
        %v485 = vadd.f32 0.0, %v484
        %v486 = vpop.f32.mrf.mxu0
        %v487 = vadd.f32 0.0, %v486
        %488 = vmatmul.bf16.gmra.mxu0 %v473
        %v489 = vpop.f32.mrf.mxu0
        %v490 = vadd.f32 0.0, %v489
        %v491 = vpop.f32.mrf.mxu0
        %v492 = vadd.f32 0.0, %v491
        %493 = vdwg.mxu0
        %v494 = vld [vmem:[%s306] sm:$0xff]
        %v495 = vld [vmem:[%s306 + $0x8] sm:$0xff]
        %v496 = vld [vmem:[%s306 + $0x10] sm:$0xff]
        %v497 = vld [vmem:[%s306 + $0x18] sm:$0xff]
        %v498 = vpack.c.bf16 %v487, %v485
        %v499 = vpack.c.bf16 %v492, %v490
        %v500 = vld [vmem:[%s271] sm:$0xf]
        %v501 = vld [vmem:[%s271 + $0x4] sm:$0xf]
        %v502 = vld [vmem:[%s271 + $0x8] sm:$0xf]
        %v503 = vld [vmem:[%s271 + $0xc] sm:$0xf]
        %v504 = vld [vmem:[%s271 + $0x10] sm:$0xf]
        %v505 = vld [vmem:[%s271 + $0x14] sm:$0xf]
        %v506 = vld [vmem:[%s271 + $0x18] sm:$0xf]
        %v507 = vld [vmem:[%s271 + $0x1c] sm:$0xf]
        %v508 = vld [vmem:[%s271 + $0x20] sm:$0xf]
        %v509 = vld [vmem:[%s271 + $0x24] sm:$0xf]
        %v510 = vld [vmem:[%s271 + $0x28] sm:$0xf]
        %v511 = vld [vmem:[%s271 + $0x2c] sm:$0xf]
        %v512 = vld [vmem:[%s271 + $0x30] sm:$0xf]
        %v513 = vld [vmem:[%s271 + $0x34] sm:$0xf]
        %v514 = vld [vmem:[%s271 + $0x38] sm:$0xf]
        %v515 = vld [vmem:[%s271 + $0x3c] sm:$0xf]
        %v532 = vunpack.c.l.b16 %v500
        %v533 = vunpack.c.l.b16 %v501
        %v534 = vunpack.c.l.b16 %v502
        %v535 = vunpack.c.l.b16 %v503
        %v536 = vunpack.c.l.b16 %v504
        %v537 = vunpack.c.l.b16 %v505
        %v538 = vunpack.c.l.b16 %v506
        %v539 = vunpack.c.l.b16 %v507
        %v540 = vunpack.c.l.b16 %v508
        %v541 = vunpack.c.l.b16 %v509
        %v542 = vunpack.c.l.b16 %v510
        %v543 = vunpack.c.l.b16 %v511
        %v544 = vunpack.c.l.b16 %v512
        %v545 = vunpack.c.l.b16 %v513
        %v546 = vunpack.c.l.b16 %v514
        %v547 = vunpack.c.l.b16 %v515
        %v548 = vpack.c.b16 %v533, %v532
        %v549 = vpack.c.b16 %v535, %v534
        %v550 = vpack.c.b16 %v537, %v536
        %v551 = vpack.c.b16 %v539, %v538
        %v552 = vpack.c.b16 %v541, %v540
        %v553 = vpack.c.b16 %v543, %v542
        %v554 = vpack.c.b16 %v545, %v544
        %v555 = vpack.c.b16 %v547, %v546
        %564 = vmatpush.bf16.msra.mxu0 %v555
        %565 = vmatpush.bf16.msra.mxu0 %v554
        %566 = vmatpush.bf16.msra.mxu0 %v553
        %567 = vmatpush.bf16.msra.mxu0 %v552
        %568 = vmatpush.bf16.msra.mxu0 %v551
        %569 = vmatpush.bf16.msra.mxu0 %v550
        %570 = vmatpush.bf16.msra.mxu0 %v549
        %571 = vmatpush.bf16.msra.mxu0 %v548
        %572 = vmatmul.bf16.gmra.mxu0 %v498
        %v573 = vpop.f32.mrf.mxu0
        %v574 = vadd.f32 0.0, %v573
        %v575 = vpop.f32.mrf.mxu0
        %v576 = vadd.f32 0.0, %v575
        %577 = vmatmul.bf16.gmra.mxu0 %v499
        %v578 = vpop.f32.mrf.mxu0
        %v579 = vadd.f32 0.0, %v578
        %v580 = vpop.f32.mrf.mxu0
        %v581 = vadd.f32 0.0, %v580
        %582 = vdwg.mxu0
        %v583 = vadd.f32 %v494, %v574
        %v584 = vadd.f32 %v495, %v576
        %v585 = vadd.f32 %v496, %v579
        %v586 = vadd.f32 %v497, %v581
        %587 = vst [vmem:[%s306] sm:$0xff] %v583
        %588 = vst [vmem:[%s306 + $0x8] sm:$0xff] %v584
        %589 = vst [vmem:[%s306 + $0x10] sm:$0xff] %v585
        %590 = vst [vmem:[%s306 + $0x18] sm:$0xff] %v586
        %s591 = sand.u32 %s139, 1
        %s592 = scalar_lea.sflag [#allocation4], %s591
        %s593 = sand.u32 %s139, 1
        %s594 = smul.addr %s593, 32
        %s595 = scalar_lea.vmem [#allocation10], %s594
        // Predicated region
        $region57: #{tpu_custom_call.1} parent=35 // pred_check
          %p596 = pneg %p149
        $region58: #{tpu_custom_call.1} parent=35 // pred_check_branch
          %598 = sbr.rel (%p596) target = $region60
        $region59: #{tpu_custom_call.1} parent=35 // pred_region
          %s599 = smul.u32 4, %s27
          %601 = vsyncadd %s592, 0
          %s602 = smul.addr %s599, 8
          %s603 = scalar_lea.hbm %s4, %s602
          %s604 = sshll.u32 %s595, 4
          %s605 = int_to_ptr.vmem [resolvable:$true] %s604
          %s606 = sshll.u32 %s603, 4
          %s607 = int_to_ptr.hbm [resolvable:$true] %s606
          %612 = dma.vmem_to_hbm [thread:$0]  %s605, 512, %s607, %s592, 128, 128, 8
        $region60: #{tpu_custom_call.1} parent=35 // pred_fallthru
          _
      $region36: #{tpu_custom_call.1} parent=5 // pred_fallthru
        _
      %p613 = scmp.le.s32.totalorder 2, %s18
      // Predicated region
      $region61: #{tpu_custom_call.1} parent=5 // pred_check
        %p614 = pneg %p613
      $region62: #{tpu_custom_call.1} parent=5 // pred_check_branch
        %616 = sbr.rel (%p614) target = $region64
      $region63: #{tpu_custom_call.1} parent=5 // pred_region
        %s617 = ssub.s32 %s18, 2
        // Predicated region
        $region65: #{tpu_custom_call.1} parent=63 // pred_check
          %p618 = pneg %p155
        $region66: #{tpu_custom_call.1} parent=63 // pred_check_branch
          %620 = sbr.rel (%p618) target = $region68
        $region67: #{tpu_custom_call.1} parent=63 // pred_region
          %s621 = sand.u32 %s140, 1
          %s622 = scalar_lea.sflag [#allocation4], %s621
          %s623 = sand.u32 %s140, 1
          %s624 = smul.addr %s623, 32
          %s625 = scalar_lea.vmem [#allocation10], %s624
          %627 = dma.done %s622, 512
        $region68: #{tpu_custom_call.1} parent=63 // pred_fallthru
          _
      $region64: #{tpu_custom_call.1} parent=5 // pred_fallthru
        _
    $region6: #{tpu_custom_call.1} parent=1 // loop_footer
      %s22 = sadd.s32 1, %s18
    $region7: #{tpu_custom_call.1} parent=1 // loop_footer_branch
      %17 = sbr.rel target = $region3
    $region8: #{tpu_custom_call.1} parent=1 // loop_exit
      _
    %628 = vsyncpa [#allocation3], 1
    %s629 = scalar_lea.sflag [#allocation3], 1
    %630 = vsyncpa %s629, 1
    %631 = vsyncpa [#allocation6], 1
    %s632 = scalar_lea.sflag [#allocation6], 1
    %633 = vsyncpa %s632, 1
    %634 = vsyncpa [#allocation9], 1
    %635 = vsyncpa [#allocation4], 1
    %s636 = scalar_lea.sflag [#allocation4], 1
    %637 = vsyncpa %s636, 1

</llo_original>
